<compile_context>
chip_gen: v5e
topology: v5e:2x2
jax: 0.10.0
libtpu: 0.0.40
codegen_flags: <defaults>
</compile_context>

<pallas_src>
import functools

import jax
import jax.numpy as jnp
from jax.experimental import pallas as pl
from jax.experimental.pallas import tpu as pltpu


def _round_up(a, m):
    return ((a + m - 1) // m) * m


def _ae_user_kernel(x_ref, gw_ref, gb_ref, hw_ref, hb_ref, out_ref):
    # x:  [TB, NQ] f32     gw: [NQ, K] bf16   gb: [1, K]  f32
    # hw: [K,  NQ] bf16    hb: [1, NQ] f32    out: [TB, NQ] f32/bf16
    x = x_ref[...].astype(jnp.bfloat16)          # in-kernel cast (MXU feed only)

    # encoder: user_raw_latent = sigmoid(g(x))   (bf16 MXU, f32 accumulate)
    z = jnp.dot(x, gw_ref[...], preferred_element_type=jnp.float32) + gb_ref[...]
    z = jax.nn.sigmoid(z)                        # f32 elementwise / EUP (v5e-safe)

    # decoder: decoded = sigmoid(h(user_latent))
    zb = z.astype(jnp.bfloat16)                  # bf16 only for the MXU feed
    y = jnp.dot(zb, hw_ref[...], preferred_element_type=jnp.float32) + hb_ref[...]
    out_ref[...] = jax.nn.sigmoid(y).astype(out_ref.dtype)


def prepare_params(g_weight, g_bias, h_weight, h_bias):
    """One-time weight prep, hoisted out of the per-forward hot path.

    g_weight: [k, nq] (PyTorch nn.Linear layout), g_bias: [k]
    h_weight: [nq, k],                            h_bias: [nq]
    """
    gw = jnp.asarray(g_weight, jnp.float32).astype(jnp.bfloat16).T   # [nq, k]
    hw = jnp.asarray(h_weight, jnp.float32).astype(jnp.bfloat16).T   # [k, nq]
    gb = jnp.asarray(g_bias, jnp.float32).reshape(1, -1)             # [1, k]
    hb = jnp.asarray(h_bias, jnp.float32).reshape(1, -1)             # [1, nq]
    return gw, gb, hw, hb


@functools.partial(jax.jit, static_argnames=("block_b", "out_dtype"))
def autoencoder_user_forward(x, gw, gb, hw, hb, theta=None, block_b=1024,
                             out_dtype=jnp.float32):
    """Pallas forward pass matching AutoEncoderUser.forward with theta=None.

    x : [B, nq] float32; (gw, gb, hw, hb) come from prepare_params().
    out_dtype: jnp.float32 (default, matches torch) or jnp.bfloat16 to halve
               the output HBM stream when downstream tolerates it.
    """
    # TODO(synk): theta path (torch.cat of a [[theta]] scalar onto the latent,
    # only defined for batch=1 / extra_latent_dim=1) is not implemented here.
    assert theta is None

    B, nq = x.shape
    k = gw.shape[1]

    # ---- batch tiling ------------------------------------------------------
    # >= 2 grid steps whenever there is enough batch to split (so the
    # "parallel" axis can shard across both v7x TensorCores); tile rounded to
    # a multiple of 16 (covers f32 and bf16 sublane packing). Choosing the
    # tile from cdiv(B, n_tiles) bounds padding waste to < 16 rows per tile.
    b_align = _round_up(B, 16)
    n_tiles = max(pl.cdiv(B, block_b), 2) if b_align >= 32 else 1
    tb = min(block_b, _round_up(pl.cdiv(B, n_tiles), 16))
    padded_b = _round_up(B, tb)
    grid = padded_b // tb

    x_in = x
    if padded_b != B:
        x_in = jnp.pad(x, ((0, padded_b - B), (0, 0)))

    out = pl.pallas_call(
        _ae_user_kernel,
        out_shape=jax.ShapeDtypeStruct((padded_b, nq), out_dtype),
        grid=(grid,),
        in_specs=[
            pl.BlockSpec((tb, nq), lambda i: (i, 0)),   # x: f32, batch-tiled, pipelined
            pl.BlockSpec((nq, k), lambda i: (0, 0)),    # gw: resident across grid
            pl.BlockSpec((1, k), lambda i: (0, 0)),     # gb
            pl.BlockSpec((k, nq), lambda i: (0, 0)),    # hw
            pl.BlockSpec((1, nq), lambda i: (0, 0)),    # hb
        ],
        out_specs=pl.BlockSpec((tb, nq), lambda i: (i, 0)),
        compiler_params=pltpu.CompilerParams(
            # batch axis is embarrassingly parallel: with grid >= 2 it shards
            # across the two TensorCores on v7x; harmless on v5e/v6e.
            dimension_semantics=("parallel",),
        ),
    )(x_in, gw, gb, hw, hb)

    if padded_b != B:
        out = out[:B]
    return out


def _torch_linear_init(key, out_features, in_features):
    """Deterministic init mimicking nn.Linear's default (uniform +/- 1/sqrt(fan_in))."""
    kw, kb = jax.random.split(key)
    bound = 1.0 / (in_features ** 0.5)
    w = jax.random.uniform(kw, (out_features, in_features), jnp.float32,
                           minval=-bound, maxval=bound)
    b = jax.random.uniform(kb, (out_features,), jnp.float32,
                           minval=-bound, maxval=bound)
    return w, b


if __name__ == "__main__":
    num_question = 128
    k = 32
    batch = 4

    root = jax.random.PRNGKey(0)
    kx, kg, kh = jax.random.split(root, 3)

    x = jax.random.normal(kx, (batch, num_question), jnp.float32)
    g_w, g_b = _torch_linear_init(kg, k, num_question)   # g: nq -> k
    h_w, h_b = _torch_linear_init(kh, num_question, k)   # h: k  -> nq

    # One-time weight prep (outside the per-call hot path).
    gw, gb, hw, hb = prepare_params(g_w, g_b, h_w, h_b)

    out = autoencoder_user_forward(x, gw, gb, hw, hb)
    out = jax.block_until_ready(out)

    # sanity check against a pure-JAX f32 reference (bf16 matmuls -> loose tol)
    ref = jax.nn.sigmoid(jax.nn.sigmoid(x @ g_w.T + g_b) @ h_w.T + h_b)
    assert out.shape == (batch, num_question)
    assert out.dtype == jnp.float32
    assert jnp.allclose(out, ref, atol=2e-2, rtol=2e-2), float(
        jnp.max(jnp.abs(out - ref)))

    print("KERNEL_OK")
</pallas_src>

<mosaic_0001>
module attributes {stable_mosaic.version = 11 : i64} {
  func.func @_ae_user_kernel(%arg0: i32, %arg1: memref<16x128xf32, #tpu.memory_space<vmem>>, %arg2: memref<128x32xbf16, #tpu.memory_space<vmem>>, %arg3: memref<1x32xf32, #tpu.memory_space<vmem>>, %arg4: memref<32x128xbf16, #tpu.memory_space<vmem>>, %arg5: memref<1x128xf32, #tpu.memory_space<vmem>>, %arg6: memref<16x128xf32, #tpu.memory_space<vmem>>) attributes {dimension_semantics = [#tpu.dimension_semantics<parallel>], iteration_bounds = array<i64: 1>, scalar_prefetch = 0 : i64, scratch_operands = 0 : i64, tpu.core_type = #tpu.core_type<tc>, window_params = [{transform_indices = @transform_0, window_bounds = array<i64: 16, 128>}, {pipeline_mode = #tpu.pipeline_mode<synchronous>, transform_indices = @transform_1, window_bounds = array<i64: 128, 32>}, {pipeline_mode = #tpu.pipeline_mode<synchronous>, transform_indices = @transform_2, window_bounds = array<i64: 1, 32>}, {pipeline_mode = #tpu.pipeline_mode<synchronous>, transform_indices = @transform_3, window_bounds = array<i64: 32, 128>}, {pipeline_mode = #tpu.pipeline_mode<synchronous>, transform_indices = @transform_4, window_bounds = array<i64: 1, 128>}, {transform_indices = @transform_5, window_bounds = array<i64: 16, 128>}]} {
    %c0 = arith.constant 0 : index
    %c0_0 = arith.constant 0 : index
    %0 = vector.load %arg1[%c0, %c0_0] : memref<16x128xf32, #tpu.memory_space<vmem>>, vector<16x128xf32>
    %1 = arith.truncf %0 : vector<16x128xf32> to vector<16x128xbf16>
    %c0_1 = arith.constant 0 : index
    %c0_2 = arith.constant 0 : index
    %2 = vector.load %arg2[%c0_1, %c0_2] : memref<128x32xbf16, #tpu.memory_space<vmem>>, vector<128x32xbf16>
    %cst = arith.constant dense<0.000000e+00> : vector<16x32xf32>
    %3 = tpu.matmul %1, %2, %cst {dimension_numbers = #tpu.dot_dimension_numbers<[1], [0], [0], [1], [0, 0, 1, 1], [], []>} : vector<16x128xbf16>, vector<128x32xbf16>, vector<16x32xf32> -> vector<16x32xf32>
    %c0_3 = arith.constant 0 : index
    %c0_4 = arith.constant 0 : index
    %4 = vector.load %arg3[%c0_3, %c0_4] : memref<1x32xf32, #tpu.memory_space<vmem>>, vector<1x32xf32>
    %5 = vector.broadcast %4 : vector<1x32xf32> to vector<16x32xf32>
    %6 = arith.addf %3, %5 : vector<16x32xf32>
    %7 = arith.negf %6 : vector<16x32xf32>
    %8 = math.exp %7 : vector<16x32xf32>
    %cst_5 = arith.constant 1.000000e+00 : f32
    %9 = vector.broadcast %cst_5 : f32 to vector<16x32xf32>
    %10 = arith.addf %9, %8 : vector<16x32xf32>
    %11 = arith.divf %9, %10 : vector<16x32xf32>
    %12 = arith.truncf %11 : vector<16x32xf32> to vector<16x32xbf16>
    %c0_6 = arith.constant 0 : index
    %c0_7 = arith.constant 0 : index
    %13 = vector.load %arg4[%c0_6, %c0_7] : memref<32x128xbf16, #tpu.memory_space<vmem>>, vector<32x128xbf16>
    %cst_8 = arith.constant dense<0.000000e+00> : vector<16x128xf32>
    %14 = tpu.matmul %12, %13, %cst_8 {dimension_numbers = #tpu.dot_dimension_numbers<[1], [0], [0], [1], [0, 0, 1, 1], [], []>} : vector<16x32xbf16>, vector<32x128xbf16>, vector<16x128xf32> -> vector<16x128xf32>
    %c0_9 = arith.constant 0 : index
    %c0_10 = arith.constant 0 : index
    %15 = vector.load %arg5[%c0_9, %c0_10] : memref<1x128xf32, #tpu.memory_space<vmem>>, vector<1x128xf32>
    %16 = vector.broadcast %15 : vector<1x128xf32> to vector<16x128xf32>
    %17 = arith.addf %14, %16 : vector<16x128xf32>
    %18 = arith.negf %17 : vector<16x128xf32>
    %19 = math.exp %18 : vector<16x128xf32>
    %cst_11 = arith.constant 1.000000e+00 : f32
    %20 = vector.broadcast %cst_11 : f32 to vector<16x128xf32>
    %21 = arith.addf %20, %19 : vector<16x128xf32>
    %22 = arith.divf %20, %21 : vector<16x128xf32>
    %c0_12 = arith.constant 0 : index
    %c0_13 = arith.constant 0 : index
    %23 = vector.load %arg6[%c0_12, %c0_13] : memref<16x128xf32, #tpu.memory_space<vmem>>, vector<16x128xf32>
    tpu.vector_store %arg6[%c0_12, %c0_13], %22 {strides = array<i32>} : memref<16x128xf32, #tpu.memory_space<vmem>>, vector<16x128xf32>,
    return
  }
  func.func @transform_0(%arg0: i32) -> (i32, i32) {
    %c0_i32 = arith.constant 0 : i32
    %c0_i32_0 = arith.constant 0 : i32
    return %arg0, %c0_i32 : i32, i32
  }
  func.func @transform_1(%arg0: i32) -> (i32, i32) {
    %c0_i32 = arith.constant 0 : i32
    %c0_i32_0 = arith.constant 0 : i32
    %c0_i32_1 = arith.constant 0 : i32
    return %c0_i32, %c0_i32_0 : i32, i32
  }
  func.func @transform_2(%arg0: i32) -> (i32, i32) {
    %c0_i32 = arith.constant 0 : i32
    %c0_i32_0 = arith.constant 0 : i32
    %c0_i32_1 = arith.constant 0 : i32
    return %c0_i32, %c0_i32_0 : i32, i32
  }
  func.func @transform_3(%arg0: i32) -> (i32, i32) {
    %c0_i32 = arith.constant 0 : i32
    %c0_i32_0 = arith.constant 0 : i32
    %c0_i32_1 = arith.constant 0 : i32
    return %c0_i32, %c0_i32_0 : i32, i32
  }
  func.func @transform_4(%arg0: i32) -> (i32, i32) {
    %c0_i32 = arith.constant 0 : i32
    %c0_i32_0 = arith.constant 0 : i32
    %c0_i32_1 = arith.constant 0 : i32
    return %c0_i32, %c0_i32_0 : i32, i32
  }
  func.func @transform_5(%arg0: i32) -> (i32, i32) {
    %c0_i32 = arith.constant 0 : i32
    %c0_i32_0 = arith.constant 0 : i32
    return %arg0, %c0_i32 : i32, i32
  }
}

</mosaic_0001>

<llo_original>
// kernel: autoencoder_user_forward.1
$region0: #{autoencoder_user_forward.1}
  #allocation0 [shape = 'u32[]', space=smem, size = 0x4, offset = 0x4, fixed_abs, tag = 'smem constant byte address 0x4 - core index']
  #allocation1 [shape = 'u32[72,128]{1,0:T(1,128)}', space=vmem, size = 0x9000, scoped, tag = 'internal scratch']
  %s0 = inlined_call_operand.vmem [shape: f32[16,128], index: 0, kind: input, shape index: {}]
  %s1 = inlined_call_operand.vmem [shape: bf16[128,32], index: 1, kind: input, shape index: {}]
  %s2 = inlined_call_operand.vmem [shape: f32[1,32], index: 2, kind: input, shape index: {}]
  %s3 = inlined_call_operand.vmem [shape: bf16[32,128], index: 3, kind: input, shape index: {}]
  %s4 = inlined_call_operand.vmem [shape: f32[1,128], index: 4, kind: input, shape index: {}]
  %s5 = inlined_call_operand.vmem [shape: f32[16,128], index: 5, kind: output, shape index: {}]
  %s6 = sld [smem:[#allocation0]]
  $region30: #{autoencoder_user_forward.1} parent=0
    _
  %s8 = ssub.s32 1, %s6
  %s9 = scalar_select 0, %s8, %s6
  // Predicated region
  $region2: #{autoencoder_user_forward.1} parent=0 // pred_check
    _
  $region3: #{autoencoder_user_forward.1} parent=0 // pred_check_branch
    %11 = sbr.rel (0) target = $region5
  $region4: #{autoencoder_user_forward.1} parent=0 // pred_region
    _
  $region5: #{autoencoder_user_forward.1} parent=0 // pred_fallthru
    _
  // Predicated region
  $region6: #{autoencoder_user_forward.1} parent=0 // pred_check
    _
  $region7: #{autoencoder_user_forward.1} parent=0 // pred_check_branch
    %13 = sbr.rel (0) target = $region9
  $region8: #{autoencoder_user_forward.1} parent=0 // pred_region
    _
  $region9: #{autoencoder_user_forward.1} parent=0 // pred_fallthru
    _
  // Predicated region
  $region10: #{autoencoder_user_forward.1} parent=0 // pred_check
    _
  $region11: #{autoencoder_user_forward.1} parent=0 // pred_check_branch
    %15 = sbr.rel (0) target = $region13
  $region12: #{autoencoder_user_forward.1} parent=0 // pred_region
    _
  $region13: #{autoencoder_user_forward.1} parent=0 // pred_fallthru
    _
  // Predicated region
  $region14: #{autoencoder_user_forward.1} parent=0 // pred_check
    _
  $region15: #{autoencoder_user_forward.1} parent=0 // pred_check_branch
    %17 = sbr.rel (0) target = $region17
  $region16: #{autoencoder_user_forward.1} parent=0 // pred_region
    _
  $region17: #{autoencoder_user_forward.1} parent=0 // pred_fallthru
    _
  // Predicated region
  $region18: #{autoencoder_user_forward.1} parent=0 // pred_check
    _
  $region19: #{autoencoder_user_forward.1} parent=0 // pred_check_branch
    %19 = sbr.rel (0) target = $region21
  $region20: #{autoencoder_user_forward.1} parent=0 // pred_region
    _
  $region21: #{autoencoder_user_forward.1} parent=0 // pred_fallthru
    _
  %v21 = vld [vmem:[%s0] sm:$0xff]
  %v22 = vld [vmem:[%s0 + $0x8] sm:$0xff]
  %v23 = vpack.c.bf16 %v22, %v21
  %v24 = vld [vmem:[%s1] sm:$0xf]
  %v25 = vld [vmem:[%s1 + $0x4] sm:$0xf]
  %v26 = vld [vmem:[%s1 + $0x8] sm:$0xf]
  %v27 = vld [vmem:[%s1 + $0xc] sm:$0xf]
  %v28 = vld [vmem:[%s1 + $0x10] sm:$0xf]
  %v29 = vld [vmem:[%s1 + $0x14] sm:$0xf]
  %v30 = vld [vmem:[%s1 + $0x18] sm:$0xf]
  %v31 = vld [vmem:[%s1 + $0x1c] sm:$0xf]
  %v32 = vld [vmem:[%s1 + $0x20] sm:$0xf]
  %v33 = vld [vmem:[%s1 + $0x24] sm:$0xf]
  %v34 = vld [vmem:[%s1 + $0x28] sm:$0xf]
  %v35 = vld [vmem:[%s1 + $0x2c] sm:$0xf]
  %v36 = vld [vmem:[%s1 + $0x30] sm:$0xf]
  %v37 = vld [vmem:[%s1 + $0x34] sm:$0xf]
  %v38 = vld [vmem:[%s1 + $0x38] sm:$0xf]
  %v39 = vld [vmem:[%s1 + $0x3c] sm:$0xf]
  %v40 = vld [vmem:[%s2] sm:$0x1]
  %v42 = vperm.slane %v40, 0
  %v60 = vunpack.c.l.b16 %v24
  %v61 = vunpack.c.l.b16 %v25
  %v62 = vunpack.c.l.b16 %v26
  %v63 = vunpack.c.l.b16 %v27
  %v64 = vunpack.c.l.b16 %v28
  %v65 = vunpack.c.l.b16 %v29
  %v66 = vunpack.c.l.b16 %v30
  %v67 = vunpack.c.l.b16 %v31
  %v68 = vunpack.c.l.b16 %v32
  %v69 = vunpack.c.l.b16 %v33
  %v70 = vunpack.c.l.b16 %v34
  %v71 = vunpack.c.l.b16 %v35
  %v72 = vunpack.c.l.b16 %v36
  %v73 = vunpack.c.l.b16 %v37
  %v74 = vunpack.c.l.b16 %v38
  %v75 = vunpack.c.l.b16 %v39
  %v76 = vpack.c.b16 %v61, %v60
  %v77 = vpack.c.b16 %v63, %v62
  %v78 = vpack.c.b16 %v65, %v64
  %v79 = vpack.c.b16 %v67, %v66
  %v80 = vpack.c.b16 %v69, %v68
  %v81 = vpack.c.b16 %v71, %v70
  %v82 = vpack.c.b16 %v73, %v72
  %v83 = vpack.c.b16 %v75, %v74
  %92 = vmatpush.bf16.msra.mxu0 %v83
  %93 = vmatpush.bf16.msra.mxu0 %v82
  %94 = vmatpush.bf16.msra.mxu0 %v81
  %95 = vmatpush.bf16.msra.mxu0 %v80
  %96 = vmatpush.bf16.msra.mxu0 %v79
  %97 = vmatpush.bf16.msra.mxu0 %v78
  %98 = vmatpush.bf16.msra.mxu0 %v77
  %99 = vmatpush.bf16.msra.mxu0 %v76
  %100 = vmatmul.bf16.gmra.mxu0 %v23
  %v101 = vpop.f32.mrf.mxu0
  %v102 = vadd.f32 %v42, %v101
  %v103 = vpop.f32.mrf.mxu0
  %v104 = vadd.f32 %v42, %v103
  %105 = vdwg.mxu0
  %v106 = vxor.u32 %v102, 2147483648
  %v107 = vxor.u32 %v104, 2147483648
  %v108 = vmul.f32 %v106, 1.442695
  %v109 = vpow.pop %v108
  %v110 = vmul.f32 %v107, 1.442695
  %v111 = vpow.pop %v110
  %v112 = vadd.f32 %v109, 1.0
  %v113 = vadd.f32 %v111, 1.0
  %v114 = vrcp.pop %v112
  %v115 = vmul.f32 %v112, %v114
  %v116 = vsub.f32 1.0, %v115
  %v117 = vmul.f32 %v114, %v116
  %v118 = vadd.f32 %v114, %v117
  %vm119 = vweird.f32 %v112
  %vm120 = vweird.f32 %v114
  %vm121 = vmor %vm119, %vm120
  %v122 = vsel %vm121, %v114, %v118
  %v123 = vand.u32 2147483647, %v112
  %vm124 = vcmp.eq.f32.partialorder %v123, 8.507059e+37
  %v125 = vand.u32 %v112, 2147483648
  %v126 = vor.u32 1.1754944e-38, %v125
  %v127 = vsel %vm124, %v126, %v122
  %v128 = vmul.f32 1.0, %v127
  %v129 = vrcp.pop %v113
  %v130 = vmul.f32 %v113, %v129
  %v131 = vsub.f32 1.0, %v130
  %v132 = vmul.f32 %v129, %v131
  %v133 = vadd.f32 %v129, %v132
  %vm134 = vweird.f32 %v113
  %vm135 = vweird.f32 %v129
  %vm136 = vmor %vm134, %vm135
  %v137 = vsel %vm136, %v129, %v133
  %v138 = vand.u32 2147483647, %v113
  %vm139 = vcmp.eq.f32.partialorder %v138, 8.507059e+37
  %v140 = vand.u32 %v113, 2147483648
  %v141 = vor.u32 1.1754944e-38, %v140
  %v142 = vsel %vm139, %v141, %v137
  %v143 = vmul.f32 1.0, %v142
  %v144 = vpack.c.bf16 %v143, %v128
  %v145 = vld [vmem:[%s3] sm:$0xf]
  %v146 = vld [vmem:[%s3 + $0x4] sm:$0xf]
  %v147 = vld [vmem:[%s3 + $0x8] sm:$0xf]
  %v148 = vld [vmem:[%s3 + $0xc] sm:$0xf]
  %v149 = vld [vmem:[%s4] sm:$0x1]
  %v151 = vperm.slane %v149, 0
  %v157 = vunpack.c.l.b16 %v145
  %v158 = vunpack.c.l.b16 %v146
  %v159 = vunpack.c.l.b16 %v147
  %v160 = vunpack.c.l.b16 %v148
  %v161 = vpack.c.b16 %v158, %v157
  %v162 = vpack.c.b16 %v160, %v159
  %vm165 = vcmask 261120
  %v167 = vsel %vm165, %v144, 0
  %169 = vmatpush.bf16.msra.mxu0 0
  %170 = vmatpush.bf16.msra.mxu0 0
  %171 = vmatpush.bf16.msra.mxu0 0
  %172 = vmatpush.bf16.msra.mxu0 0
  %173 = vmatpush.bf16.msra.mxu0 0
  %174 = vmatpush.bf16.msra.mxu0 0
  %175 = vmatpush.bf16.msra.mxu0 %v162
  %176 = vmatpush.bf16.msra.mxu0 %v161
  %177 = vmatmul.bf16.gmra.mxu0 %v167
  %v178 = vpop.f32.mrf.mxu0
  %v179 = vadd.f32 %v151, %v178
  %v180 = vpop.f32.mrf.mxu0
  %v181 = vadd.f32 %v151, %v180
  %182 = vdwg.mxu0
  %v183 = vxor.u32 %v179, 2147483648
  %v184 = vxor.u32 %v181, 2147483648
  %v185 = vmul.f32 %v183, 1.442695
  %v186 = vpow.pop %v185
  %v187 = vmul.f32 %v184, 1.442695
  %v188 = vpow.pop %v187
  %v189 = vadd.f32 %v186, 1.0
  %v190 = vadd.f32 %v188, 1.0
  %v191 = vrcp.pop %v189
  %v192 = vmul.f32 %v189, %v191
  %v193 = vsub.f32 1.0, %v192
  %v194 = vmul.f32 %v191, %v193
  %v195 = vadd.f32 %v191, %v194
  %vm196 = vweird.f32 %v189
  %vm197 = vweird.f32 %v191
  %vm198 = vmor %vm196, %vm197
  %v199 = vsel %vm198, %v191, %v195
  %v200 = vand.u32 2147483647, %v189
  %vm201 = vcmp.eq.f32.partialorder %v200, 8.507059e+37
  %v202 = vand.u32 %v189, 2147483648
  %v203 = vor.u32 1.1754944e-38, %v202
  %v204 = vsel %vm201, %v203, %v199
  %v205 = vmul.f32 1.0, %v204
  %v206 = vrcp.pop %v190
  %v207 = vmul.f32 %v190, %v206
  %v208 = vsub.f32 1.0, %v207
  %v209 = vmul.f32 %v206, %v208
  %v210 = vadd.f32 %v206, %v209
  %vm211 = vweird.f32 %v190
  %vm212 = vweird.f32 %v206
  %vm213 = vmor %vm211, %vm212
  %v214 = vsel %vm213, %v206, %v210
  %v215 = vand.u32 2147483647, %v190
  %vm216 = vcmp.eq.f32.partialorder %v215, 8.507059e+37
  %v217 = vand.u32 %v190, 2147483648
  %v218 = vor.u32 1.1754944e-38, %v217
  %v219 = vsel %vm216, %v218, %v214
  %v220 = vmul.f32 1.0, %v219
  %221 = vst [vmem:[%s5] sm:$0xff] %v205
  %222 = vst [vmem:[%s5 + $0x8] sm:$0xff] %v220
  // Predicated region
  $region22: #{autoencoder_user_forward.1} parent=0 // pred_check
    _
  $region23: #{autoencoder_user_forward.1} parent=0 // pred_check_branch
    %224 = sbr.rel (0) target = $region25
  $region24: #{autoencoder_user_forward.1} parent=0 // pred_region
    _
  $region25: #{autoencoder_user_forward.1} parent=0 // pred_fallthru
    _
  // Predicated region
  $region26: #{autoencoder_user_forward.1} parent=0 // pred_check
    _
  $region27: #{autoencoder_user_forward.1} parent=0 // pred_check_branch
    %226 = sbr.rel (0) target = $region29
  $region28: #{autoencoder_user_forward.1} parent=0 // pred_region
    _
  $region29: #{autoencoder_user_forward.1} parent=0 // pred_fallthru
    _

</llo_original>
